<compile_context>
chip_gen: v6e
topology: v6e:2x2x1
jax: 0.10.0
libtpu: 0.0.40
codegen_flags: <defaults>
</compile_context>

<pallas_src>
import jax
import jax.numpy as jnp
from jax.experimental import pallas as pl
from jax.experimental.pallas import tpu as pltpu


def _round_up(a: int, b: int) -> int:
    return (a + b - 1) // b * b


def _pick_vmem_limit(needed_bytes: int) -> int:
    """Scoped-VMEM limit: enough for our footprint, capped below physical VMEM."""
    phys = 128 << 20  # v5e/v6e per-core VMEM; v7x reports 64 MiB
    try:
        phys = int(pltpu.get_tpu_info().vmem_capacity_bytes)
    except Exception:
        pass
    cap = (phys * 3) // 4  # leave headroom for Mosaic internal scratch / bookkeeping
    return int(min(cap, max(needed_bytes, 32 << 20)))


def _gps_mlp_kernel(x_ref, w1_ref, b1_ref, w2_ref, b2_ref, o_ref):
    # x_ref : (T, 2k)  packed rows (k original rows per packed row)
    # w1_ref: (2k, k*H) block-diagonal f32     b1_ref: (1, k*H) f32
    # w2_ref: (k*H, k*D) block-diagonal bf16   b2_ref: (1, k*D) f32
    # o_ref : (T, k*D)  lane-dense output slab
    x = x_ref[...]

    # Layer 1: tiny-K (2k) matmul in f32 on the MXU. The kernel is HBM-bound, so the
    # MXU has plenty of slack; f32 keeps the raw GPS coordinates at full precision.
    h = jnp.dot(x, w1_ref[...], preferred_element_type=jnp.float32) + b1_ref[...]
    h = jnp.maximum(h, 0.0)  # ReLU on the VPU

    # Layer 2: bf16 operands (MXU-native single-pass), f32 accumulate.
    out = jnp.dot(h.astype(jnp.bfloat16), w2_ref[...],
                  preferred_element_type=jnp.float32) + b2_ref[...]
    o_ref[...] = out.astype(o_ref.dtype)


def gps_embedding(x, w1, b1, w2, b2, *, tile_n: int = 8192):
    """x: (..., 2) float32 -> (..., dim) float32."""
    lead = x.shape[:-1]
    n = 1
    for s in lead:
        n *= s
    x2d = x.reshape(n, 2).astype(jnp.float32)

    hidden = w1.shape[1]
    dim = w2.shape[1]

    # Lane-packing factor: fold k rows into the lane axis so the output block is a
    # lane-dense (..., 128) slab and layer 2 fills the MXU contraction depth.
    k = 128 // dim if (dim < 128 and 128 % dim == 0) else 1
    unit = 8 * k  # keeps the packed row tile a multiple of 8 sublanes

    # Big tiles amortize the fixed per-grid-step overhead; clamp to ~ceil(n/2) so the
    # row grid keeps >= 2 steps for mid-sized N (both v7x TensorCores get work).
    tile_n = max(unit, min(int(tile_n), _round_up(max(-(-n // 2), 1), unit)))
    tile_n = _round_up(tile_n, unit)
    n_pad = _round_up(n, tile_n)
    if n_pad != n:
        x2d = jnp.pad(x2d, ((0, n_pad - n), (0, 0)))

    # Pack k rows per packed row: xp[r, 2j:2j+2] == x[r*k + j, :]  (pure reshape).
    xp = x2d.reshape(n_pad // k, 2 * k)

    # Block-diagonal packed weights (k copies on the diagonal) + tiled biases.
    eye = jnp.eye(k, dtype=jnp.float32)
    w1p = jnp.kron(eye, w1.astype(jnp.float32))                       # (2k, k*H)
    b1p = jnp.tile(b1.astype(jnp.float32).reshape(1, hidden), (1, k))  # (1, k*H)
    w2p = jnp.kron(eye, w2.astype(jnp.float32)).astype(jnp.bfloat16)  # (k*H, k*D)
    b2p = jnp.tile(b2.astype(jnp.float32).reshape(1, dim), (1, k))    # (1, k*D)

    tn_p = tile_n // k
    grid = (n_pad // tile_n,)

    # VMEM footprint: double-buffered x/out tiles (lane-padded) + resident weights.
    lane = 128
    x_tile_b = tn_p * _round_up(2 * k, lane) * 4
    o_tile_b = tn_p * _round_up(k * dim, lane) * 4
    weights_b = w1p.size * 4 + w2p.size * 2 + (b1p.size + b2p.size) * 4
    needed = 2 * (x_tile_b + o_tile_b) + weights_b + (8 << 20)
    vmem_limit = _pick_vmem_limit(needed)

    # TODO(synk): if dim grows large (resident w2p > ~8 MiB), add a D grid axis with a
    # (hidden, tile_d) w2 BlockSpec so the working set stays bounded on v7x's 64 MiB VMEM.
    # TODO(synk): optionally emit bf16 output (halves HBM writeback, biggest win on v5e)
    # if downstream consumers accept it; kept f32 here to match the PyTorch module.
    out = pl.pallas_call(
        _gps_mlp_kernel,
        out_shape=jax.ShapeDtypeStruct((n_pad // k, k * dim), jnp.float32),
        grid_spec=pltpu.PrefetchScalarGridSpec(
            num_scalar_prefetch=0,
            grid=grid,
            in_specs=[
                # Streamed packed activations: new block per grid step.
                pl.BlockSpec((tn_p, 2 * k), lambda i: (i, 0)),
                # Packed weights / biases: constant index_map -> VMEM-resident.
                pl.BlockSpec((2 * k, k * hidden), lambda i: (0, 0)),
                pl.BlockSpec((1, k * hidden), lambda i: (0, 0)),
                pl.BlockSpec((k * hidden, k * dim), lambda i: (0, 0)),
                pl.BlockSpec((1, k * dim), lambda i: (0, 0)),
            ],
            out_specs=pl.BlockSpec((tn_p, k * dim), lambda i: (i, 0)),
        ),
        compiler_params=pltpu.CompilerParams(
            dimension_semantics=("parallel",),   # independent row tiles -> v7x megacore
            vmem_limit_bytes=vmem_limit,
        ),
    )(xp, w1p, b1p, w2p, b2p)

    # Unpack lanes back to rows (pure reshape), drop padding rows.
    out = out.reshape(n_pad, dim)
    if n_pad != n:
        out = out[:n]
    return out.reshape(*lead, dim)


def init_params(key, dim):
    """Deterministic synthetic parameters matching nn.Linear shapes, stored (in, out)."""
    hidden = dim * 2
    k1, k2, k3, k4 = jax.random.split(key, 4)
    bound1 = 1.0 / jnp.sqrt(2.0)
    w1 = jax.random.uniform(k1, (2, hidden), jnp.float32, -bound1, bound1)
    b1 = jax.random.uniform(k2, (1, hidden), jnp.float32, -bound1, bound1)
    bound2 = 1.0 / jnp.sqrt(float(hidden))
    w2 = jax.random.uniform(k3, (hidden, dim), jnp.float32, -bound2, bound2)
    b2 = jax.random.uniform(k4, (1, dim), jnp.float32, -bound2, bound2)
    return w1, b1, w2, b2


if __name__ == "__main__":
    dim = 32
    batch, seq = 2, 8

    key = jax.random.PRNGKey(0)
    kx, kp = jax.random.split(key)

    x = jax.random.normal(kx, (batch, seq, 2), jnp.float32)  # GPS coords (lat, lon)
    w1, b1, w2, b2 = init_params(kp, dim)

    y = gps_embedding(x, w1, b1, w2, b2)
    y = jax.block_until_ready(y)

    # Reference check in plain JAX (pure f32). Layer-2 operands go through the MXU in
    # bf16 (f32 accumulate), so the tolerance is relaxed accordingly.
    ref = jnp.maximum(x.reshape(-1, 2) @ w1 + b1, 0.0) @ w2 + b2
    ref = ref.reshape(batch, seq, dim)
    assert y.shape == (batch, seq, dim), y.shape
    assert jnp.allclose(y, ref, atol=3e-2, rtol=3e-2), float(jnp.max(jnp.abs(y - ref)))

    print("KERNEL_OK")
</pallas_src>

<mosaic_0001>
module attributes {stable_mosaic.version = 11 : i64} {
  func.func @_gps_mlp_kernel(%arg0: i32, %arg1: memref<8x8xf32, #tpu.memory_space<vmem>>, %arg2: memref<8x256xf32, #tpu.memory_space<vmem>>, %arg3: memref<1x256xf32, #tpu.memory_space<vmem>>, %arg4: memref<256x128xbf16, #tpu.memory_space<vmem>>, %arg5: memref<1x128xf32, #tpu.memory_space<vmem>>, %arg6: memref<8x128xf32, #tpu.memory_space<vmem>>) attributes {dimension_semantics = [#tpu.dimension_semantics<parallel>], iteration_bounds = array<i64: 1>, scalar_prefetch = 0 : i64, scratch_operands = 0 : i64, tpu.core_type = #tpu.core_type<tc>, window_params = [{transform_indices = @transform_0, window_bounds = array<i64: 8, 8>}, {pipeline_mode = #tpu.pipeline_mode<synchronous>, transform_indices = @transform_1, window_bounds = array<i64: 8, 256>}, {pipeline_mode = #tpu.pipeline_mode<synchronous>, transform_indices = @transform_2, window_bounds = array<i64: 1, 256>}, {pipeline_mode = #tpu.pipeline_mode<synchronous>, transform_indices = @transform_3, window_bounds = array<i64: 256, 128>}, {pipeline_mode = #tpu.pipeline_mode<synchronous>, transform_indices = @transform_4, window_bounds = array<i64: 1, 128>}, {transform_indices = @transform_5, window_bounds = array<i64: 8, 128>}]} {
    %c0 = arith.constant 0 : index
    %c0_0 = arith.constant 0 : index
    %0 = vector.load %arg1[%c0, %c0_0] : memref<8x8xf32, #tpu.memory_space<vmem>>, vector<8x8xf32>
    %c0_1 = arith.constant 0 : index
    %c0_2 = arith.constant 0 : index
    %1 = vector.load %arg2[%c0_1, %c0_2] : memref<8x256xf32, #tpu.memory_space<vmem>>, vector<8x256xf32>
    %cst = arith.constant dense<0.000000e+00> : vector<8x256xf32>
    %2 = tpu.matmul %0, %1, %cst {dimension_numbers = #tpu.dot_dimension_numbers<[1], [0], [0], [1], [0, 0, 1, 1], [], []>} : vector<8x8xf32>, vector<8x256xf32>, vector<8x256xf32> -> vector<8x256xf32>
    %c0_3 = arith.constant 0 : index
    %c0_4 = arith.constant 0 : index
    %3 = vector.load %arg3[%c0_3, %c0_4] : memref<1x256xf32, #tpu.memory_space<vmem>>, vector<1x256xf32>
    %4 = vector.broadcast %3 : vector<1x256xf32> to vector<8x256xf32>
    %5 = arith.addf %2, %4 : vector<8x256xf32>
    %cst_5 = arith.constant 0.000000e+00 : f32
    %6 = vector.broadcast %cst_5 : f32 to vector<8x256xf32>
    %7 = arith.maximumf %5, %6 : vector<8x256xf32>
    %8 = arith.truncf %7 : vector<8x256xf32> to vector<8x256xbf16>
    %c0_6 = arith.constant 0 : index
    %c0_7 = arith.constant 0 : index
    %9 = vector.load %arg4[%c0_6, %c0_7] : memref<256x128xbf16, #tpu.memory_space<vmem>>, vector<256x128xbf16>
    %cst_8 = arith.constant dense<0.000000e+00> : vector<8x128xf32>
    %10 = tpu.matmul %8, %9, %cst_8 {dimension_numbers = #tpu.dot_dimension_numbers<[1], [0], [0], [1], [0, 0, 1, 1], [], []>} : vector<8x256xbf16>, vector<256x128xbf16>, vector<8x128xf32> -> vector<8x128xf32>
    %c0_9 = arith.constant 0 : index
    %c0_10 = arith.constant 0 : index
    %11 = vector.load %arg5[%c0_9, %c0_10] : memref<1x128xf32, #tpu.memory_space<vmem>>, vector<1x128xf32>
    %12 = vector.broadcast %11 : vector<1x128xf32> to vector<8x128xf32>
    %13 = arith.addf %10, %12 : vector<8x128xf32>
    %c0_11 = arith.constant 0 : index
    %c0_12 = arith.constant 0 : index
    %14 = vector.load %arg6[%c0_11, %c0_12] : memref<8x128xf32, #tpu.memory_space<vmem>>, vector<8x128xf32>
    tpu.vector_store %arg6[%c0_11, %c0_12], %13 {strides = array<i32>} : memref<8x128xf32, #tpu.memory_space<vmem>>, vector<8x128xf32>,
    return
  }
  func.func @transform_0(%arg0: i32) -> (i32, i32) {
    %c0_i32 = arith.constant 0 : i32
    %c0_i32_0 = arith.constant 0 : i32
    return %arg0, %c0_i32 : i32, i32
  }
  func.func @transform_1(%arg0: i32) -> (i32, i32) {
    %c0_i32 = arith.constant 0 : i32
    %c0_i32_0 = arith.constant 0 : i32
    %c0_i32_1 = arith.constant 0 : i32
    return %c0_i32, %c0_i32_0 : i32, i32
  }
  func.func @transform_2(%arg0: i32) -> (i32, i32) {
    %c0_i32 = arith.constant 0 : i32
    %c0_i32_0 = arith.constant 0 : i32
    %c0_i32_1 = arith.constant 0 : i32
    return %c0_i32, %c0_i32_0 : i32, i32
  }
  func.func @transform_3(%arg0: i32) -> (i32, i32) {
    %c0_i32 = arith.constant 0 : i32
    %c0_i32_0 = arith.constant 0 : i32
    %c0_i32_1 = arith.constant 0 : i32
    return %c0_i32, %c0_i32_0 : i32, i32
  }
  func.func @transform_4(%arg0: i32) -> (i32, i32) {
    %c0_i32 = arith.constant 0 : i32
    %c0_i32_0 = arith.constant 0 : i32
    %c0_i32_1 = arith.constant 0 : i32
    return %c0_i32, %c0_i32_0 : i32, i32
  }
  func.func @transform_5(%arg0: i32) -> (i32, i32) {
    %c0_i32 = arith.constant 0 : i32
    %c0_i32_0 = arith.constant 0 : i32
    return %arg0, %c0_i32 : i32, i32
  }
}

</mosaic_0001>

<llo_original>
// kernel: tpu_custom_call.1
$region0: #{tpu_custom_call.1}
  #allocation0 [shape = 'u32[]', space=smem, size = 0x4, offset = 0x4, fixed_abs, tag = 'smem constant byte address 0x4 - core index']
  #allocation1 [shape = 'u32[144,128]{1,0:T(1,128)}', space=vmem, size = 0x12000, scoped, tag = 'internal scratch']
  %s0 = inlined_call_operand.hbm [shape: f32[8,8], index: 0, kind: input, shape index: {}]
  %s1 = inlined_call_operand.hbm [shape: f32[8,256], index: 1, kind: input, shape index: {}]
  %s2 = inlined_call_operand.vmem [shape: f32[1,256], index: 2, kind: input, shape index: {}]
  %s3 = inlined_call_operand.hbm [shape: bf16[256,128], index: 3, kind: input, shape index: {}]
  %s4 = inlined_call_operand.vmem [shape: f32[1,128], index: 4, kind: input, shape index: {}]
  %s5 = inlined_call_operand.hbm [shape: f32[8,128], index: 5, kind: output, shape index: {}]
  %s6 = sld [smem:[#allocation0]]
  $region42: #{tpu_custom_call.1} parent=0
    _
  %s8 = ssub.s32 1, %s6
  %s9 = scalar_select 0, %s8, %s6
  $region1: #{tpu_custom_call.1} parent=0
    #allocation2 [shape = 'u8[4096]{0}', space=vmem, size = 0x1000, scoped, tag = 'input window, operand 0, single buffered']
    #allocation3 [shape = 's32[1]{0}', space=sflag, size = 0x4, scoped, tag = 'scoped memory for tpu_custom_call.1']
    #allocation4 [shape = 's32[1]{0}', space=sflag, size = 0x4, scoped, tag = 'scoped memory for tpu_custom_call.1']
    #allocation5 [shape = 'u8[8192]{0}', space=vmem, size = 0x2000, scoped, tag = 'input window, operand 1, single buffered']
    #allocation6 [shape = 's32[1]{0}', space=sflag, size = 0x4, scoped, tag = 'scoped memory for tpu_custom_call.1']
    #allocation7 [shape = 'u8[65536]{0}', space=vmem, size = 0x10000, scoped, tag = 'input window, operand 3, single buffered']
    #allocation8 [shape = 'u8[4096]{0}', space=vmem, size = 0x1000, scoped, tag = 'output window, operand 0, single buffered']
    %10 = vsyncpa [#allocation3], 0
    %11 = vsyncpa [#allocation6], 0
    %12 = vsyncpa [#allocation4], 0
    // Predicated region
    $region2: #{tpu_custom_call.1} parent=1 // pred_check
      _
    $region3: #{tpu_custom_call.1} parent=1 // pred_check_branch
      %14 = sbr.rel (0) target = $region5
    $region4: #{tpu_custom_call.1} parent=1 // pred_region
      %s16 = ssub.s32 128, 128
      %17 = vsyncadd [#allocation3], %s16
      %s19 = sshll.u32 [#allocation2], 4
      %s20 = int_to_ptr.vmem [resolvable:$true] %s19
      %22 = dma.hbm_to_vmem [thread:$0]  %s0, 128, %s20, [#allocation3]
    $region5: #{tpu_custom_call.1} parent=1 // pred_fallthru
      _
    // Predicated region
    $region6: #{tpu_custom_call.1} parent=1 // pred_check
      _
    $region7: #{tpu_custom_call.1} parent=1 // pred_check_branch
      %24 = sbr.rel (0) target = $region9
    $region8: #{tpu_custom_call.1} parent=1 // pred_region
      %s26 = ssub.s32 256, 256
      %27 = vsyncadd [#allocation6], %s26
      %s29 = sshll.u32 [#allocation5], 4
      %s30 = int_to_ptr.vmem [resolvable:$true] %s29
      %32 = dma.hbm_to_vmem [thread:$0]  %s1, 256, %s30, [#allocation6]
    $region9: #{tpu_custom_call.1} parent=1 // pred_fallthru
      _
    // Predicated region
    $region10: #{tpu_custom_call.1} parent=1 // pred_check
      _
    $region11: #{tpu_custom_call.1} parent=1 // pred_check_branch
      %34 = sbr.rel (0) target = $region13
    $region12: #{tpu_custom_call.1} parent=1 // pred_region
      _
    $region13: #{tpu_custom_call.1} parent=1 // pred_fallthru
      _
    // Predicated region
    $region14: #{tpu_custom_call.1} parent=1 // pred_check
      _
    $region15: #{tpu_custom_call.1} parent=1 // pred_check_branch
      %36 = sbr.rel (0) target = $region17
    $region16: #{tpu_custom_call.1} parent=1 // pred_region
      %s38 = ssub.s32 2048, 2048
      %39 = vsyncadd [#allocation6], %s38
      %s40 = sshll.u32 [#allocation7], 4
      %s41 = int_to_ptr.vmem [resolvable:$true] %s40
      %46 = dma.hbm_to_vmem [thread:$0]  %s3, 2048, %s41, [#allocation6], 64, 64, 4
    $region17: #{tpu_custom_call.1} parent=1 // pred_fallthru
      _
    // Predicated region
    $region18: #{tpu_custom_call.1} parent=1 // pred_check
      _
    $region19: #{tpu_custom_call.1} parent=1 // pred_check_branch
      %48 = sbr.rel (0) target = $region21
    $region20: #{tpu_custom_call.1} parent=1 // pred_region
      _
    $region21: #{tpu_custom_call.1} parent=1 // pred_fallthru
      _
    // Predicated region
    $region22: #{tpu_custom_call.1} parent=1 // pred_check
      _
    $region23: #{tpu_custom_call.1} parent=1 // pred_check_branch
      %50 = sbr.rel (0) target = $region25
    $region24: #{tpu_custom_call.1} parent=1 // pred_region
      %51 = dma.done [#allocation3], 128
    $region25: #{tpu_custom_call.1} parent=1 // pred_fallthru
      _
    // Predicated region
    $region26: #{tpu_custom_call.1} parent=1 // pred_check
      _
    $region27: #{tpu_custom_call.1} parent=1 // pred_check_branch
      %53 = sbr.rel (0) target = $region29
    $region28: #{tpu_custom_call.1} parent=1 // pred_region
      %54 = dma.done [#allocation6], 256
    $region29: #{tpu_custom_call.1} parent=1 // pred_fallthru
      _
    // Predicated region
    $region30: #{tpu_custom_call.1} parent=1 // pred_check
      _
    $region31: #{tpu_custom_call.1} parent=1 // pred_check_branch
      %56 = sbr.rel (0) target = $region33
    $region32: #{tpu_custom_call.1} parent=1 // pred_region
      %57 = dma.done [#allocation6], 2048
    $region33: #{tpu_custom_call.1} parent=1 // pred_fallthru
      _
    %v59 = vld [vmem:[#allocation2] sm:$0xff]
    %v60 = vld [vmem:[#allocation5] sm:$0xff]
    %v61 = vld [vmem:[#allocation5 + $0x8] sm:$0xff]
    %v62 = vld [vmem:[%s2] sm:$0x3]
    %v64 = vlaneseq
    %v65 = vshrl.u32 %v64, 7
    %v66 = vsub.s32 0, %v65
    %v67 = vrot.slane %v62, %v66
    %v68 = vlaneseq
    %v69 = vshrl.u32 %v68, 7
    %v70 = vsub.s32 1, %v69
    %v71 = vrot.slane %v62, %v70
    %vm74 = vcmask 64512
    %v76 = vsel %vm74, %v59, 0
    %78 = vmatprep.subr.mxu0 0.0
    %79 = vmatpush1.msra.mxu0 0.0
    %80 = vmatprep.subr.mxu0 0.0
    %81 = vmatpush1.msra.mxu0 0.0
    %82 = vmatprep.subr.mxu0 0.0
    %83 = vmatpush1.msra.mxu0 0.0
    %84 = vmatprep.subr.mxu0 0.0
    %85 = vmatpush1.msra.mxu0 0.0
    %86 = vmatprep.subr.mxu0 0.0
    %87 = vmatpush1.msra.mxu0 0.0
    %88 = vmatprep.subr.mxu0 0.0
    %89 = vmatpush1.msra.mxu0 0.0
    %90 = vmatprep.subr.mxu0 0.0
    %91 = vmatpush1.msra.mxu0 0.0
    %92 = vmatprep.subr.mxu0 0.0
    %93 = vmatpush1.msra.mxu0 0.0
    %94 = vmatprep.subr.mxu0 0.0
    %95 = vmatpush1.msra.mxu0 0.0
    %96 = vmatprep.subr.mxu0 0.0
    %97 = vmatpush1.msra.mxu0 0.0
    %98 = vmatprep.subr.mxu0 0.0
    %99 = vmatpush1.msra.mxu0 0.0
    %100 = vmatprep.subr.mxu0 0.0
    %101 = vmatpush1.msra.mxu0 0.0
    %102 = vmatprep.subr.mxu0 0.0
    %103 = vmatpush1.msra.mxu0 0.0
    %104 = vmatprep.subr.mxu0 0.0
    %105 = vmatpush1.msra.mxu0 0.0
    %106 = vmatprep.subr.mxu0 0.0
    %107 = vmatpush1.msra.mxu0 0.0
    %108 = vmatprep.subr.mxu0 %v61
    %109 = vmatpush1.msra.mxu0 %v60
    %110 = vmatprep.subr.mxu0 0.0
    %111 = vmatpush2.msra.mxu0 0.0
    %112 = vmatprep.subr.mxu0 0.0
    %113 = vmatpush2.msra.mxu0 0.0
    %114 = vmatprep.subr.mxu0 0.0
    %115 = vmatpush2.msra.mxu0 0.0
    %116 = vmatprep.subr.mxu0 0.0
    %117 = vmatpush2.msra.mxu0 0.0
    %118 = vmatprep.subr.mxu0 0.0
    %119 = vmatpush2.msra.mxu0 0.0
    %120 = vmatprep.subr.mxu0 0.0
    %121 = vmatpush2.msra.mxu0 0.0
    %122 = vmatprep.subr.mxu0 0.0
    %123 = vmatpush2.msra.mxu0 0.0
    %124 = vmatprep.subr.mxu0 0.0
    %125 = vmatpush2.msra.mxu0 0.0
    %126 = vmatprep.subr.mxu0 0.0
    %127 = vmatpush2.msra.mxu0 0.0
    %128 = vmatprep.subr.mxu0 0.0
    %129 = vmatpush2.msra.mxu0 0.0
    %130 = vmatprep.subr.mxu0 0.0
    %131 = vmatpush2.msra.mxu0 0.0
    %132 = vmatprep.subr.mxu0 0.0
    %133 = vmatpush2.msra.mxu0 0.0
    %134 = vmatprep.subr.mxu0 0.0
    %135 = vmatpush2.msra.mxu0 0.0
    %136 = vmatprep.subr.mxu0 0.0
    %137 = vmatpush2.msra.mxu0 0.0
    %138 = vmatprep.subr.mxu0 0.0
    %139 = vmatpush2.msra.mxu0 0.0
    %140 = vmatprep.subr.mxu0 0.0
    %141 = vmatpush2.msra.mxu0 0.0
    %142 = vmatprep.mubr.f32.mxu0 0.0
    %143 = vmatmul.mubr.f32.gmra.mxu0 %v76
    %v144 = vpop.f32.mrf.mxu0
    %v145 = vadd.f32 %v67, %v144
    %v146 = vpop.f32.mrf.mxu0
    %v147 = vadd.f32 %v71, %v146
    %148 = vdwg.mxu0
    %v149 = vmax.f32 %v145, 0.0
    %v150 = vmax.f32 %v147, 0.0
    %v151 = vpack.c.bf16 %v149, %v149
    %v152 = vpack.c.bf16 %v150, %v150
    %v153 = vld [vmem:[#allocation7] sm:$0xf]
    %v154 = vld [vmem:[#allocation7 + $0x4] sm:$0xf]
    %v155 = vld [vmem:[#allocation7 + $0x8] sm:$0xf]
    %v156 = vld [vmem:[#allocation7 + $0xc] sm:$0xf]
    %v157 = vld [vmem:[#allocation7 + $0x10] sm:$0xf]
    %v158 = vld [vmem:[#allocation7 + $0x14] sm:$0xf]
    %v159 = vld [vmem:[#allocation7 + $0x18] sm:$0xf]
    %v160 = vld [vmem:[#allocation7 + $0x1c] sm:$0xf]
    %v161 = vld [vmem:[#allocation7 + $0x20] sm:$0xf]
    %v162 = vld [vmem:[#allocation7 + $0x24] sm:$0xf]
    %v163 = vld [vmem:[#allocation7 + $0x28] sm:$0xf]
    %v164 = vld [vmem:[#allocation7 + $0x2c] sm:$0xf]
    %v165 = vld [vmem:[#allocation7 + $0x30] sm:$0xf]
    %v166 = vld [vmem:[#allocation7 + $0x34] sm:$0xf]
    %v167 = vld [vmem:[#allocation7 + $0x38] sm:$0xf]
    %v168 = vld [vmem:[#allocation7 + $0x3c] sm:$0xf]
    %v169 = vld [vmem:[#allocation7 + $0x40] sm:$0xf]
    %v170 = vld [vmem:[#allocation7 + $0x44] sm:$0xf]
    %v171 = vld [vmem:[#allocation7 + $0x48] sm:$0xf]
    %v172 = vld [vmem:[#allocation7 + $0x4c] sm:$0xf]
    %v173 = vld [vmem:[#allocation7 + $0x50] sm:$0xf]
    %v174 = vld [vmem:[#allocation7 + $0x54] sm:$0xf]
    %v175 = vld [vmem:[#allocation7 + $0x58] sm:$0xf]
    %v176 = vld [vmem:[#allocation7 + $0x5c] sm:$0xf]
    %v177 = vld [vmem:[#allocation7 + $0x60] sm:$0xf]
    %v178 = vld [vmem:[#allocation7 + $0x64] sm:$0xf]
    %v179 = vld [vmem:[#allocation7 + $0x68] sm:$0xf]
    %v180 = vld [vmem:[#allocation7 + $0x6c] sm:$0xf]
    %v181 = vld [vmem:[#allocation7 + $0x70] sm:$0xf]
    %v182 = vld [vmem:[#allocation7 + $0x74] sm:$0xf]
    %v183 = vld [vmem:[#allocation7 + $0x78] sm:$0xf]
    %v184 = vld [vmem:[#allocation7 + $0x7c] sm:$0xf]
    %v185 = vld [vmem:[%s4] sm:$0x1]
    %v187 = vlaneseq
    %v188 = vshrl.u32 %v187, 7
    %v189 = vsub.s32 0, %v188
    %v190 = vrot.slane %v185, %v189
    %v224 = vunpack.c.l.b16 %v153
    %v225 = vunpack.c.l.b16 %v154
    %v226 = vunpack.c.l.b16 %v155
    %v227 = vunpack.c.l.b16 %v156
    %v228 = vunpack.c.l.b16 %v157
    %v229 = vunpack.c.l.b16 %v158
    %v230 = vunpack.c.l.b16 %v159
    %v231 = vunpack.c.l.b16 %v160
    %v232 = vunpack.c.l.b16 %v161
    %v233 = vunpack.c.l.b16 %v162
    %v234 = vunpack.c.l.b16 %v163
    %v235 = vunpack.c.l.b16 %v164
    %v236 = vunpack.c.l.b16 %v165
    %v237 = vunpack.c.l.b16 %v166
    %v238 = vunpack.c.l.b16 %v167
    %v239 = vunpack.c.l.b16 %v168
    %v240 = vunpack.c.l.b16 %v169
    %v241 = vunpack.c.l.b16 %v170
    %v242 = vunpack.c.l.b16 %v171
    %v243 = vunpack.c.l.b16 %v172
    %v244 = vunpack.c.l.b16 %v173
    %v245 = vunpack.c.l.b16 %v174
    %v246 = vunpack.c.l.b16 %v175
    %v247 = vunpack.c.l.b16 %v176
    %v248 = vunpack.c.l.b16 %v177
    %v249 = vunpack.c.l.b16 %v178
    %v250 = vunpack.c.l.b16 %v179
    %v251 = vunpack.c.l.b16 %v180
    %v252 = vunpack.c.l.b16 %v181
    %v253 = vunpack.c.l.b16 %v182
    %v254 = vunpack.c.l.b16 %v183
    %v255 = vunpack.c.l.b16 %v184
    %v256 = vpack.c.b16 %v225, %v224
    %v257 = vpack.c.b16 %v227, %v226
    %v258 = vpack.c.b16 %v229, %v228
    %v259 = vpack.c.b16 %v231, %v230
    %v260 = vpack.c.b16 %v233, %v232
    %v261 = vpack.c.b16 %v235, %v234
    %v262 = vpack.c.b16 %v237, %v236
    %v263 = vpack.c.b16 %v239, %v238
    %v264 = vpack.c.b16 %v241, %v240
    %v265 = vpack.c.b16 %v243, %v242
    %v266 = vpack.c.b16 %v245, %v244
    %v267 = vpack.c.b16 %v247, %v246
    %v268 = vpack.c.b16 %v249, %v248
    %v269 = vpack.c.b16 %v251, %v250
    %v270 = vpack.c.b16 %v253, %v252
    %v271 = vpack.c.b16 %v255, %v254
    %288 = vmatprep.subr.bf16.mxu0 0
    %289 = vmatpush1.bf16.msra.mxu0 %v263
    %290 = vmatprep.subr.bf16.mxu0 0
    %291 = vmatpush1.bf16.msra.mxu0 %v262
    %292 = vmatprep.subr.bf16.mxu0 0
    %293 = vmatpush1.bf16.msra.mxu0 %v261
    %294 = vmatprep.subr.bf16.mxu0 0
    %295 = vmatpush1.bf16.msra.mxu0 %v260
    %296 = vmatprep.subr.bf16.mxu0 0
    %297 = vmatpush1.bf16.msra.mxu0 %v259
    %298 = vmatprep.subr.bf16.mxu0 0
    %299 = vmatpush1.bf16.msra.mxu0 %v258
    %300 = vmatprep.subr.bf16.mxu0 0
    %301 = vmatpush1.bf16.msra.mxu0 %v257
    %302 = vmatprep.subr.bf16.mxu0 0
    %303 = vmatpush1.bf16.msra.mxu0 %v256
    %304 = vmatprep.subr.bf16.mxu0 0
    %305 = vmatpush2.bf16.msra.mxu0 %v271
    %306 = vmatprep.subr.bf16.mxu0 0
    %307 = vmatpush2.bf16.msra.mxu0 %v270
    %308 = vmatprep.subr.bf16.mxu0 0
    %309 = vmatpush2.bf16.msra.mxu0 %v269
    %310 = vmatprep.subr.bf16.mxu0 0
    %311 = vmatpush2.bf16.msra.mxu0 %v268
    %312 = vmatprep.subr.bf16.mxu0 0
    %313 = vmatpush2.bf16.msra.mxu0 %v267
    %314 = vmatprep.subr.bf16.mxu0 0
    %315 = vmatpush2.bf16.msra.mxu0 %v266
    %316 = vmatprep.subr.bf16.mxu0 0
    %317 = vmatpush2.bf16.msra.mxu0 %v265
    %318 = vmatprep.subr.bf16.mxu0 0
    %319 = vmatpush2.bf16.msra.mxu0 %v264
    %320 = vmatprep.mubr.bf16.mxu0 %v152
    %321 = vmatmul.mubr.bf16.gmra.mxu0 %v151
    %v322 = vpop.f32.mrf.mxu0
    %v323 = vadd.f32 %v190, %v322
    %v324 = vpop.f32.mrf.mxu0
    %v325 = vpop.f32.mrf.mxu0
    %v326 = vpop.f32.mrf.mxu0
    %327 = vdwg.mxu0
    %328 = vst [vmem:[#allocation8] sm:$0xff] %v323
    // Predicated region
    $region34: #{tpu_custom_call.1} parent=1 // pred_check
      _
    $region35: #{tpu_custom_call.1} parent=1 // pred_check_branch
      %330 = sbr.rel (0) target = $region37
    $region36: #{tpu_custom_call.1} parent=1 // pred_region
      %s332 = ssub.s32 128, 128
      %333 = vsyncadd [#allocation4], %s332
      %s335 = sshll.u32 [#allocation8], 4
      %s336 = int_to_ptr.vmem [resolvable:$true] %s335
      %338 = dma.vmem_to_hbm [thread:$0]  %s336, 128, %s5, [#allocation4]
    $region37: #{tpu_custom_call.1} parent=1 // pred_fallthru
      _
    // Predicated region
    $region38: #{tpu_custom_call.1} parent=1 // pred_check
      _
    $region39: #{tpu_custom_call.1} parent=1 // pred_check_branch
      %340 = sbr.rel (0) target = $region41
    $region40: #{tpu_custom_call.1} parent=1 // pred_region
      %341 = dma.done [#allocation4], 128
    $region41: #{tpu_custom_call.1} parent=1 // pred_fallthru
      _
    %342 = vsyncpa [#allocation3], 1
    %343 = vsyncpa [#allocation6], 1
    %344 = vsyncpa [#allocation4], 1

</llo_original>
